<compile_context>
chip_gen: v6e
topology: v6e:2x2x1
jax: 0.10.0
libtpu: 0.0.40
codegen_flags: <defaults>
</compile_context>

<pallas_src>
import functools

import jax
import jax.numpy as jnp
from jax.experimental import pallas as pl
from jax.experimental.pallas import tpu as pltpu

LANE = 128       # TPU vreg lane width (last-dim tiling quantum)
ROW_ALIGN = 16   # bf16 packs 16 rows per sublane group -> 16-row batch tiles


def _round_up(x, m):
    return ((x + m - 1) // m) * m


def _cdiv(a, b):
    return -(-a // b)


def feat_nn_kernel(x_ref, w1_ref, b1_ref, w2_ref, b2_ref, o_ref):
    # Cast x to the MXU compute dtype in-kernel (x streams in native dtype).
    x = x_ref[...].astype(w1_ref.dtype)
    # fc1: Linear with BatchNorm1d (eval) folded into W1/b1; f32 accumulation.
    h = jnp.dot(x, w1_ref[...], preferred_element_type=jnp.float32)
    h = h + b1_ref[...]                      # (TB, Hp) + (1, Hp), f32
    h = jnp.maximum(h, 0.0)                  # ReLU (f32 on the VPU)
    # Dropout(p=0.5) -> identity in eval mode.
    # fc2: Linear.  Cast activations to the MXU compute dtype, accumulate f32.
    y = jnp.dot(h.astype(w2_ref.dtype), w2_ref[...],
                preferred_element_type=jnp.float32)
    y = y + b2_ref[...]                      # (TB, Op) + (1, Op), f32
    # F.normalize(p=2, dim=1, eps=1e-12).  Padded output columns are exactly
    # zero (zero W2 columns + zero b2 pad), so the norm is unaffected.
    sumsq = jnp.sum(y * y, axis=-1, keepdims=True)
    inv = jax.lax.rsqrt(jnp.maximum(sumsq, 1e-24))   # == 1 / max(||y||, 1e-12)
    o_ref[...] = (y * inv).astype(o_ref.dtype)


@functools.partial(jax.jit,
                   static_argnames=("block_n", "eps", "compute_dtype"))
def feat_nn_forward(x, w1, b1, gamma, beta, run_mean, run_var, w2, b2,
                    *, block_n=512, eps=1e-5, compute_dtype=jnp.bfloat16):
    """Eval-mode feat_nn forward: fc1(Lin->BN->ReLU->Drop) -> fc2 -> L2 norm."""
    N, F = x.shape
    H = w1.shape[1]
    O = w2.shape[1]

    # --- One-shot parameter algebra (outside the kernel, f32) ---------------
    # Fold BatchNorm1d (eval, running stats) into fc1's weight and bias:
    #   BN(x@W1 + b1) = x@(W1*scale) + (b1*scale + beta - mean*scale)
    scale = gamma * jax.lax.rsqrt(run_var + eps)             # (H,)
    w1_f = w1 * scale[None, :]                               # (F, H)
    b1_f = b1 * scale + beta - run_mean * scale              # (H,)

    # --- Lane padding: hidden and output dims to full 128-lane widths -------
    h_pad = _round_up(H, LANE)
    o_pad = _round_up(O, LANE)
    w1_p = jnp.pad(w1_f, ((0, 0), (0, h_pad - H)))           # (F, Hp)
    b1_p = jnp.pad(b1_f, ((0, h_pad - H),))                  # (Hp,)
    w2_p = jnp.pad(w2, ((0, h_pad - H), (0, o_pad - O)))     # (Hp, Op)
    b2_p = jnp.pad(b2, ((0, o_pad - O),))                    # (Op,)

    # --- Batch tiling: adaptive, 16-row aligned, >=2 steps for v7x megacore -
    min_steps = 2 if N > 128 else 1
    n_steps = max(min_steps, _cdiv(N, block_n))
    blk = min(_round_up(block_n, ROW_ALIGN),
              _round_up(_cdiv(N, n_steps), ROW_ALIGN))
    n_pad = _round_up(N, blk)
    x_p = x if n_pad == N else jnp.pad(x, ((0, n_pad - N), (0, 0)))

    # Weights/biases: weights in compute_dtype (bf16 default), biases f32.
    # x stays in its native dtype; it is cast inside the kernel.
    w1_c = w1_p.astype(compute_dtype)
    w2_c = w2_p.astype(compute_dtype)
    b1_2d = b1_p.reshape(1, h_pad).astype(jnp.float32)
    b2_2d = b2_p.reshape(1, o_pad).astype(jnp.float32)

    out_dtype = x.dtype
    x_item = jnp.dtype(x.dtype).itemsize
    o_item = jnp.dtype(out_dtype).itemsize
    c_item = jnp.dtype(compute_dtype).itemsize

    # --- VMEM budget (weights resident, streamed tiles double-buffered) -----
    w_bytes = (F * h_pad + h_pad * o_pad) * c_item + (h_pad + o_pad) * 4
    stream_bytes = blk * F * x_item + blk * o_pad * o_item
    interm_bytes = blk * (h_pad + o_pad) * 4 + blk * h_pad * c_item
    vmem_needed = 2 * (w_bytes + stream_bytes) + interm_bytes
    vmem_limit = int(min(max(2 * vmem_needed, 32 * 1024 * 1024),
                         60 * 1024 * 1024))
    # NOTE: for very large F/H (bf16 weights approaching ~20-24 MiB) add a
    # K-tiling grid axis over F instead of holding both weights resident
    # (matters most on v7x: 64 MiB physical VMEM).

    # --- Advisory cost hint for XLA scheduling around the custom call -------
    flops = 2 * n_pad * (F * h_pad + h_pad * o_pad)
    bytes_accessed = (n_pad * F * x_item + n_pad * o_pad * o_item
                      + (F * h_pad + h_pad * o_pad) * c_item
                      + (h_pad + o_pad) * 4)
    cost = pl.CostEstimate(flops=flops, transcendentals=n_pad,
                           bytes_accessed=bytes_accessed)

    grid = (n_pad // blk,)
    out = pl.pallas_call(
        feat_nn_kernel,
        out_shape=jax.ShapeDtypeStruct((n_pad, o_pad), out_dtype),
        grid_spec=pltpu.PrefetchScalarGridSpec(
            num_scalar_prefetch=0,
            grid=grid,
            in_specs=[
                pl.BlockSpec((blk, F), lambda i: (i, 0)),     # x tile (native dtype)
                pl.BlockSpec((F, h_pad), lambda i: (0, 0)),   # W1 (BN-folded, lane-pad)
                pl.BlockSpec((1, h_pad), lambda i: (0, 0)),   # b1 (BN-folded, lane-pad)
                pl.BlockSpec((h_pad, o_pad), lambda i: (0, 0)),  # W2 (lane-pad)
                pl.BlockSpec((1, o_pad), lambda i: (0, 0)),   # b2 (lane-pad)
            ],
            out_specs=pl.BlockSpec((blk, o_pad), lambda i: (i, 0)),
        ),
        compiler_params=pltpu.CompilerParams(
            dimension_semantics=("parallel",),
            vmem_limit_bytes=vmem_limit),
        cost_estimate=cost,
    )(x_p, w1_c, b1_2d, w2_c, b2_2d)

    # Slice off batch / lane padding (output is already in x.dtype).
    return out[:N, :O]


def reference_forward(x, w1, b1, gamma, beta, run_mean, run_var, w2, b2,
                      eps=1e-5):
    h = x @ w1 + b1
    h = (h - run_mean) * jax.lax.rsqrt(run_var + eps) * gamma + beta
    h = jnp.maximum(h, 0.0)
    y = h @ w2 + b2
    n = jnp.maximum(jnp.linalg.norm(y, axis=1, keepdims=True), 1e-12)
    return y / n


def _make_params(key, feat, hid, out):
    k = jax.random.split(key, 8)
    w1 = jax.random.normal(k[0], (feat, hid), dtype=jnp.float32) * 0.1
    b1 = jax.random.normal(k[1], (hid,), dtype=jnp.float32) * 0.01
    gamma = 1.0 + 0.05 * jax.random.normal(k[2], (hid,), dtype=jnp.float32)
    beta = 0.01 * jax.random.normal(k[3], (hid,), dtype=jnp.float32)
    run_mean = 0.1 * jax.random.normal(k[4], (hid,), dtype=jnp.float32)
    run_var = jnp.abs(1.0 + 0.05 * jax.random.normal(k[5], (hid,),
                                                     dtype=jnp.float32))
    w2 = jax.random.normal(k[6], (hid, out), dtype=jnp.float32) * 0.1
    b2 = jax.random.normal(k[7], (out,), dtype=jnp.float32) * 0.01
    return w1, b1, gamma, beta, run_mean, run_var, w2, b2


if __name__ == "__main__":
    # Small shapes consistent with feat_nn(feat_dim, hidden_dim, out_dim).
    FEAT, HID, OUT = 32, 64, 16
    key = jax.random.PRNGKey(0)
    kx, kp = jax.random.split(key)
    params = _make_params(kp, FEAT, HID, OUT)

    # --- Case 1: small batch (single grid step) -----------------------------
    N1 = 16
    x1 = jax.random.normal(kx, (N1, FEAT), dtype=jnp.float32)
    ref1 = reference_forward(x1, *params)

    out1_f32 = jax.block_until_ready(
        feat_nn_forward(x1, *params, compute_dtype=jnp.float32))
    assert out1_f32.shape == (N1, OUT)
    assert jnp.allclose(out1_f32, ref1, atol=1e-5, rtol=1e-5), (
        f"f32 path max err {jnp.max(jnp.abs(out1_f32 - ref1))}")

    out1 = jax.block_until_ready(feat_nn_forward(x1, *params))
    assert out1.shape == (N1, OUT)
    assert jnp.allclose(out1, ref1, atol=2e-2, rtol=2e-2), (
        f"bf16 path max err {jnp.max(jnp.abs(out1 - ref1))}")

    # --- Case 2: batch not tile-aligned, >=2 grid steps (adaptive tiling) ---
    N2 = 300
    x2 = jax.random.normal(jax.random.fold_in(kx, 1), (N2, FEAT),
                           dtype=jnp.float32)
    ref2 = reference_forward(x2, *params)

    out2_f32 = jax.block_until_ready(
        feat_nn_forward(x2, *params, compute_dtype=jnp.float32))
    assert out2_f32.shape == (N2, OUT)
    assert jnp.allclose(out2_f32, ref2, atol=1e-5, rtol=1e-5), (
        f"f32 path (N=300) max err {jnp.max(jnp.abs(out2_f32 - ref2))}")

    out2 = jax.block_until_ready(feat_nn_forward(x2, *params))
    assert out2.shape == (N2, OUT)
    assert jnp.allclose(out2, ref2, atol=2e-2, rtol=2e-2), (
        f"bf16 path (N=300) max err {jnp.max(jnp.abs(out2 - ref2))}")

    print("KERNEL_OK")
</pallas_src>

<mosaic_0001>
module attributes {stable_mosaic.version = 11 : i64} {
  func.func @feat_nn_kernel(%arg0: i32, %arg1: memref<16x32xf32, #tpu.memory_space<vmem>>, %arg2: memref<32x128xf32, #tpu.memory_space<vmem>>, %arg3: memref<1x128xf32, #tpu.memory_space<vmem>>, %arg4: memref<128x128xf32, #tpu.memory_space<vmem>>, %arg5: memref<1x128xf32, #tpu.memory_space<vmem>>, %arg6: memref<16x128xf32, #tpu.memory_space<vmem>>) attributes {dimension_semantics = [#tpu.dimension_semantics<parallel>], iteration_bounds = array<i64: 1>, scalar_prefetch = 0 : i64, scratch_operands = 0 : i64, tpu.core_type = #tpu.core_type<tc>, window_params = [{transform_indices = @transform_0, window_bounds = array<i64: 16, 32>}, {pipeline_mode = #tpu.pipeline_mode<synchronous>, transform_indices = @transform_1, window_bounds = array<i64: 32, 128>}, {pipeline_mode = #tpu.pipeline_mode<synchronous>, transform_indices = @transform_2, window_bounds = array<i64: 1, 128>}, {pipeline_mode = #tpu.pipeline_mode<synchronous>, transform_indices = @transform_3, window_bounds = array<i64: 128, 128>}, {pipeline_mode = #tpu.pipeline_mode<synchronous>, transform_indices = @transform_4, window_bounds = array<i64: 1, 128>}, {transform_indices = @transform_5, window_bounds = array<i64: 16, 128>}]} {
    %c0 = arith.constant 0 : index
    %c0_0 = arith.constant 0 : index
    %0 = vector.load %arg1[%c0, %c0_0] : memref<16x32xf32, #tpu.memory_space<vmem>>, vector<16x32xf32>
    %c0_1 = arith.constant 0 : index
    %c0_2 = arith.constant 0 : index
    %1 = vector.load %arg2[%c0_1, %c0_2] : memref<32x128xf32, #tpu.memory_space<vmem>>, vector<32x128xf32>
    %cst = arith.constant dense<0.000000e+00> : vector<16x128xf32>
    %2 = tpu.matmul %0, %1, %cst {dimension_numbers = #tpu.dot_dimension_numbers<[1], [0], [0], [1], [0, 0, 1, 1], [], []>} : vector<16x32xf32>, vector<32x128xf32>, vector<16x128xf32> -> vector<16x128xf32>
    %c0_3 = arith.constant 0 : index
    %c0_4 = arith.constant 0 : index
    %3 = vector.load %arg3[%c0_3, %c0_4] : memref<1x128xf32, #tpu.memory_space<vmem>>, vector<1x128xf32>
    %4 = vector.broadcast %3 : vector<1x128xf32> to vector<16x128xf32>
    %5 = arith.addf %2, %4 : vector<16x128xf32>
    %cst_5 = arith.constant 0.000000e+00 : f32
    %6 = vector.broadcast %cst_5 : f32 to vector<16x128xf32>
    %7 = arith.maximumf %5, %6 : vector<16x128xf32>
    %c0_6 = arith.constant 0 : index
    %c0_7 = arith.constant 0 : index
    %8 = vector.load %arg4[%c0_6, %c0_7] : memref<128x128xf32, #tpu.memory_space<vmem>>, vector<128x128xf32>
    %cst_8 = arith.constant dense<0.000000e+00> : vector<16x128xf32>
    %9 = tpu.matmul %7, %8, %cst_8 {dimension_numbers = #tpu.dot_dimension_numbers<[1], [0], [0], [1], [0, 0, 1, 1], [], []>} : vector<16x128xf32>, vector<128x128xf32>, vector<16x128xf32> -> vector<16x128xf32>
    %c0_9 = arith.constant 0 : index
    %c0_10 = arith.constant 0 : index
    %10 = vector.load %arg5[%c0_9, %c0_10] : memref<1x128xf32, #tpu.memory_space<vmem>>, vector<1x128xf32>
    %11 = vector.broadcast %10 : vector<1x128xf32> to vector<16x128xf32>
    %12 = arith.addf %9, %11 : vector<16x128xf32>
    %13 = arith.mulf %12, %12 : vector<16x128xf32>
    %cst_11 = arith.constant dense<0.000000e+00> : vector<16xf32>
    %14 = vector.multi_reduction <add>, %13, %cst_11 [1] : vector<16x128xf32> to vector<16xf32>
    %15 = vector.shape_cast %14 : vector<16xf32> to vector<16x1xf32>
    %cst_12 = arith.constant 1.000000e-24 : f32
    %16 = vector.broadcast %cst_12 : f32 to vector<16x1xf32>
    %17 = arith.maximumf %15, %16 : vector<16x1xf32>
    %18 = math.rsqrt %17 : vector<16x1xf32>
    %19 = vector.broadcast %18 : vector<16x1xf32> to vector<16x128xf32>
    %20 = arith.mulf %12, %19 : vector<16x128xf32>
    %c0_13 = arith.constant 0 : index
    %c0_14 = arith.constant 0 : index
    %21 = vector.load %arg6[%c0_13, %c0_14] : memref<16x128xf32, #tpu.memory_space<vmem>>, vector<16x128xf32>
    tpu.vector_store %arg6[%c0_13, %c0_14], %20 {strides = array<i32>} : memref<16x128xf32, #tpu.memory_space<vmem>>, vector<16x128xf32>,
    return
  }
  func.func @transform_0(%arg0: i32) -> (i32, i32) {
    %c0_i32 = arith.constant 0 : i32
    %c0_i32_0 = arith.constant 0 : i32
    return %arg0, %c0_i32 : i32, i32
  }
  func.func @transform_1(%arg0: i32) -> (i32, i32) {
    %c0_i32 = arith.constant 0 : i32
    %c0_i32_0 = arith.constant 0 : i32
    %c0_i32_1 = arith.constant 0 : i32
    return %c0_i32, %c0_i32_0 : i32, i32
  }
  func.func @transform_2(%arg0: i32) -> (i32, i32) {
    %c0_i32 = arith.constant 0 : i32
    %c0_i32_0 = arith.constant 0 : i32
    %c0_i32_1 = arith.constant 0 : i32
    return %c0_i32, %c0_i32_0 : i32, i32
  }
  func.func @transform_3(%arg0: i32) -> (i32, i32) {
    %c0_i32 = arith.constant 0 : i32
    %c0_i32_0 = arith.constant 0 : i32
    %c0_i32_1 = arith.constant 0 : i32
    return %c0_i32, %c0_i32_0 : i32, i32
  }
  func.func @transform_4(%arg0: i32) -> (i32, i32) {
    %c0_i32 = arith.constant 0 : i32
    %c0_i32_0 = arith.constant 0 : i32
    %c0_i32_1 = arith.constant 0 : i32
    return %c0_i32, %c0_i32_0 : i32, i32
  }
  func.func @transform_5(%arg0: i32) -> (i32, i32) {
    %c0_i32 = arith.constant 0 : i32
    %c0_i32_0 = arith.constant 0 : i32
    return %arg0, %c0_i32 : i32, i32
  }
}

</mosaic_0001>

<llo_original>
// kernel: feat_nn_forward.1
$region0: #{feat_nn_forward.1}
  #allocation0 [shape = 'u32[]', space=smem, size = 0x4, offset = 0x4, fixed_abs, tag = 'smem constant byte address 0x4 - core index']
  #allocation1 [shape = 'u32[144,128]{1,0:T(1,128)}', space=vmem, size = 0x12000, scoped, tag = 'internal scratch']
  %s0 = inlined_call_operand.vmem [shape: f32[16,32], index: 0, kind: input, shape index: {}]
  %s1 = inlined_call_operand.vmem [shape: f32[32,128], index: 1, kind: input, shape index: {}]
  %s2 = inlined_call_operand.vmem [shape: f32[1,128], index: 2, kind: input, shape index: {}]
  %s3 = inlined_call_operand.vmem [shape: f32[128,128], index: 3, kind: input, shape index: {}]
  %s4 = inlined_call_operand.vmem [shape: f32[1,128], index: 4, kind: input, shape index: {}]
  %s5 = inlined_call_operand.hbm [shape: f32[16,128], index: 5, kind: output, shape index: {}]
  %s6 = sld [smem:[#allocation0]]
  $region30: #{feat_nn_forward.1} parent=0
    _
  %s8 = ssub.s32 1, %s6
  %s9 = scalar_select 0, %s8, %s6
  $region1: #{feat_nn_forward.1} parent=0
    #allocation2 [shape = 'u8[8192]{0}', space=vmem, size = 0x2000, scoped, tag = 'output window, operand 0, single buffered']
    #allocation3 [shape = 's32[1]{0}', space=sflag, size = 0x4, scoped, tag = 'scoped memory for feat_nn_forward.1']
    %10 = vsyncpa [#allocation3], 0
    // Predicated region
    $region2: #{feat_nn_forward.1} parent=1 // pred_check
      _
    $region3: #{feat_nn_forward.1} parent=1 // pred_check_branch
      %12 = sbr.rel (0) target = $region5
    $region4: #{feat_nn_forward.1} parent=1 // pred_region
      _
    $region5: #{feat_nn_forward.1} parent=1 // pred_fallthru
      _
    // Predicated region
    $region6: #{feat_nn_forward.1} parent=1 // pred_check
      _
    $region7: #{feat_nn_forward.1} parent=1 // pred_check_branch
      %14 = sbr.rel (0) target = $region9
    $region8: #{feat_nn_forward.1} parent=1 // pred_region
      _
    $region9: #{feat_nn_forward.1} parent=1 // pred_fallthru
      _
    // Predicated region
    $region10: #{feat_nn_forward.1} parent=1 // pred_check
      _
    $region11: #{feat_nn_forward.1} parent=1 // pred_check_branch
      %16 = sbr.rel (0) target = $region13
    $region12: #{feat_nn_forward.1} parent=1 // pred_region
      _
    $region13: #{feat_nn_forward.1} parent=1 // pred_fallthru
      _
    // Predicated region
    $region14: #{feat_nn_forward.1} parent=1 // pred_check
      _
    $region15: #{feat_nn_forward.1} parent=1 // pred_check_branch
      %18 = sbr.rel (0) target = $region17
    $region16: #{feat_nn_forward.1} parent=1 // pred_region
      _
    $region17: #{feat_nn_forward.1} parent=1 // pred_fallthru
      _
    // Predicated region
    $region18: #{feat_nn_forward.1} parent=1 // pred_check
      _
    $region19: #{feat_nn_forward.1} parent=1 // pred_check_branch
      %20 = sbr.rel (0) target = $region21
    $region20: #{feat_nn_forward.1} parent=1 // pred_region
      _
    $region21: #{feat_nn_forward.1} parent=1 // pred_fallthru
      _
    %v21 = vld [vmem:[%s0] sm:$0xff]
    %v22 = vld [vmem:[%s0 + $0x8] sm:$0xff]
    %v23 = vld [vmem:[%s1] sm:$0xff]
    %v24 = vld [vmem:[%s1 + $0x8] sm:$0xff]
    %v25 = vld [vmem:[%s1 + $0x10] sm:$0xff]
    %v26 = vld [vmem:[%s1 + $0x18] sm:$0xff]
    %v27 = vld [vmem:[%s2] sm:$0x1]
    %v29 = vlaneseq
    %v30 = vshrl.u32 %v29, 7
    %v31 = vsub.s32 0, %v30
    %v32 = vrot.slane %v27, %v31
    %vm34 = vcmask 261120
    %v36 = vsel %vm34, %v21, 0
    %v39 = vsel %vm34, %v22, 0
    %41 = vmatprep.subr.mxu0 0.0
    %42 = vmatpush1.msra.mxu0 0.0
    %43 = vmatprep.subr.mxu0 0.0
    %44 = vmatpush1.msra.mxu0 0.0
    %45 = vmatprep.subr.mxu0 0.0
    %46 = vmatpush1.msra.mxu0 0.0
    %47 = vmatprep.subr.mxu0 0.0
    %48 = vmatpush1.msra.mxu0 0.0
    %49 = vmatprep.subr.mxu0 0.0
    %50 = vmatpush1.msra.mxu0 0.0
    %51 = vmatprep.subr.mxu0 0.0
    %52 = vmatpush1.msra.mxu0 0.0
    %53 = vmatprep.subr.mxu0 0.0
    %54 = vmatpush1.msra.mxu0 0.0
    %55 = vmatprep.subr.mxu0 0.0
    %56 = vmatpush1.msra.mxu0 0.0
    %57 = vmatprep.subr.mxu0 0.0
    %58 = vmatpush1.msra.mxu0 0.0
    %59 = vmatprep.subr.mxu0 0.0
    %60 = vmatpush1.msra.mxu0 0.0
    %61 = vmatprep.subr.mxu0 0.0
    %62 = vmatpush1.msra.mxu0 0.0
    %63 = vmatprep.subr.mxu0 0.0
    %64 = vmatpush1.msra.mxu0 0.0
    %65 = vmatprep.subr.mxu0 0.0
    %66 = vmatpush1.msra.mxu0 %v26
    %67 = vmatprep.subr.mxu0 0.0
    %68 = vmatpush1.msra.mxu0 %v25
    %69 = vmatprep.subr.mxu0 0.0
    %70 = vmatpush1.msra.mxu0 %v24
    %71 = vmatprep.subr.mxu0 0.0
    %72 = vmatpush1.msra.mxu0 %v23
    %73 = vmatprep.subr.mxu0 0.0
    %74 = vmatpush2.msra.mxu0 0.0
    %75 = vmatprep.subr.mxu0 0.0
    %76 = vmatpush2.msra.mxu0 0.0
    %77 = vmatprep.subr.mxu0 0.0
    %78 = vmatpush2.msra.mxu0 0.0
    %79 = vmatprep.subr.mxu0 0.0
    %80 = vmatpush2.msra.mxu0 0.0
    %81 = vmatprep.subr.mxu0 0.0
    %82 = vmatpush2.msra.mxu0 0.0
    %83 = vmatprep.subr.mxu0 0.0
    %84 = vmatpush2.msra.mxu0 0.0
    %85 = vmatprep.subr.mxu0 0.0
    %86 = vmatpush2.msra.mxu0 0.0
    %87 = vmatprep.subr.mxu0 0.0
    %88 = vmatpush2.msra.mxu0 0.0
    %89 = vmatprep.subr.mxu0 0.0
    %90 = vmatpush2.msra.mxu0 0.0
    %91 = vmatprep.subr.mxu0 0.0
    %92 = vmatpush2.msra.mxu0 0.0
    %93 = vmatprep.subr.mxu0 0.0
    %94 = vmatpush2.msra.mxu0 0.0
    %95 = vmatprep.subr.mxu0 0.0
    %96 = vmatpush2.msra.mxu0 0.0
    %97 = vmatprep.subr.mxu0 0.0
    %98 = vmatpush2.msra.mxu0 0.0
    %99 = vmatprep.subr.mxu0 0.0
    %100 = vmatpush2.msra.mxu0 0.0
    %101 = vmatprep.subr.mxu0 0.0
    %102 = vmatpush2.msra.mxu0 0.0
    %103 = vmatprep.subr.mxu0 0.0
    %104 = vmatpush2.msra.mxu0 0.0
    %105 = vmatprep.mubr.f32.mxu0 0.0
    %106 = vmatmul.mubr.f32.gmra.mxu0 %v36
    %v107 = vpop.f32.mrf.mxu0
    %v108 = vadd.f32 %v32, %v107
    %v109 = vpop.f32.mrf.mxu0
    %110 = vmatprep.mubr.f32.mxu0 0.0
    %111 = vmatmul.mubr.f32.gmra.mxu0 %v39
    %v112 = vpop.f32.mrf.mxu0
    %v113 = vadd.f32 %v32, %v112
    %v114 = vpop.f32.mrf.mxu0
    %115 = vdwg.mxu0
    %v116 = vmax.f32 %v108, 0.0
    %v117 = vmax.f32 %v113, 0.0
    %v118 = vld [vmem:[%s3] sm:$0xff]
    %v119 = vld [vmem:[%s3 + $0x8] sm:$0xff]
    %v120 = vld [vmem:[%s3 + $0x10] sm:$0xff]
    %v121 = vld [vmem:[%s3 + $0x18] sm:$0xff]
    %v122 = vld [vmem:[%s3 + $0x20] sm:$0xff]
    %v123 = vld [vmem:[%s3 + $0x28] sm:$0xff]
    %v124 = vld [vmem:[%s3 + $0x30] sm:$0xff]
    %v125 = vld [vmem:[%s3 + $0x38] sm:$0xff]
    %v126 = vld [vmem:[%s3 + $0x40] sm:$0xff]
    %v127 = vld [vmem:[%s3 + $0x48] sm:$0xff]
    %v128 = vld [vmem:[%s3 + $0x50] sm:$0xff]
    %v129 = vld [vmem:[%s3 + $0x58] sm:$0xff]
    %v130 = vld [vmem:[%s3 + $0x60] sm:$0xff]
    %v131 = vld [vmem:[%s3 + $0x68] sm:$0xff]
    %v132 = vld [vmem:[%s3 + $0x70] sm:$0xff]
    %v133 = vld [vmem:[%s3 + $0x78] sm:$0xff]
    %v134 = vld [vmem:[%s4] sm:$0x1]
    %v136 = vlaneseq
    %v137 = vshrl.u32 %v136, 7
    %v138 = vsub.s32 0, %v137
    %v139 = vrot.slane %v134, %v138
    %141 = vmatprep.subr.mxu0 0.0
    %142 = vmatpush1.msra.mxu0 %v133
    %143 = vmatprep.subr.mxu0 0.0
    %144 = vmatpush1.msra.mxu0 %v132
    %145 = vmatprep.subr.mxu0 0.0
    %146 = vmatpush1.msra.mxu0 %v131
    %147 = vmatprep.subr.mxu0 0.0
    %148 = vmatpush1.msra.mxu0 %v130
    %149 = vmatprep.subr.mxu0 0.0
    %150 = vmatpush1.msra.mxu0 %v129
    %151 = vmatprep.subr.mxu0 0.0
    %152 = vmatpush1.msra.mxu0 %v128
    %153 = vmatprep.subr.mxu0 0.0
    %154 = vmatpush1.msra.mxu0 %v127
    %155 = vmatprep.subr.mxu0 0.0
    %156 = vmatpush1.msra.mxu0 %v126
    %157 = vmatprep.subr.mxu0 0.0
    %158 = vmatpush1.msra.mxu0 %v125
    %159 = vmatprep.subr.mxu0 0.0
    %160 = vmatpush1.msra.mxu0 %v124
    %161 = vmatprep.subr.mxu0 0.0
    %162 = vmatpush1.msra.mxu0 %v123
    %163 = vmatprep.subr.mxu0 0.0
    %164 = vmatpush1.msra.mxu0 %v122
    %165 = vmatprep.subr.mxu0 0.0
    %166 = vmatpush1.msra.mxu0 %v121
    %167 = vmatprep.subr.mxu0 0.0
    %168 = vmatpush1.msra.mxu0 %v120
    %169 = vmatprep.subr.mxu0 0.0
    %170 = vmatpush1.msra.mxu0 %v119
    %171 = vmatprep.subr.mxu0 0.0
    %172 = vmatpush1.msra.mxu0 %v118
    %173 = vmatprep.subr.mxu0 0.0
    %174 = vmatpush2.msra.mxu0 0.0
    %175 = vmatprep.subr.mxu0 0.0
    %176 = vmatpush2.msra.mxu0 0.0
    %177 = vmatprep.subr.mxu0 0.0
    %178 = vmatpush2.msra.mxu0 0.0
    %179 = vmatprep.subr.mxu0 0.0
    %180 = vmatpush2.msra.mxu0 0.0
    %181 = vmatprep.subr.mxu0 0.0
    %182 = vmatpush2.msra.mxu0 0.0
    %183 = vmatprep.subr.mxu0 0.0
    %184 = vmatpush2.msra.mxu0 0.0
    %185 = vmatprep.subr.mxu0 0.0
    %186 = vmatpush2.msra.mxu0 0.0
    %187 = vmatprep.subr.mxu0 0.0
    %188 = vmatpush2.msra.mxu0 0.0
    %189 = vmatprep.subr.mxu0 0.0
    %190 = vmatpush2.msra.mxu0 0.0
    %191 = vmatprep.subr.mxu0 0.0
    %192 = vmatpush2.msra.mxu0 0.0
    %193 = vmatprep.subr.mxu0 0.0
    %194 = vmatpush2.msra.mxu0 0.0
    %195 = vmatprep.subr.mxu0 0.0
    %196 = vmatpush2.msra.mxu0 0.0
    %197 = vmatprep.subr.mxu0 0.0
    %198 = vmatpush2.msra.mxu0 0.0
    %199 = vmatprep.subr.mxu0 0.0
    %200 = vmatpush2.msra.mxu0 0.0
    %201 = vmatprep.subr.mxu0 0.0
    %202 = vmatpush2.msra.mxu0 0.0
    %203 = vmatprep.subr.mxu0 0.0
    %204 = vmatpush2.msra.mxu0 0.0
    %205 = vmatprep.mubr.f32.mxu0 0.0
    %206 = vmatmul.mubr.f32.gmra.mxu0 %v116
    %v207 = vpop.f32.mrf.mxu0
    %v208 = vadd.f32 %v139, %v207
    %v209 = vpop.f32.mrf.mxu0
    %210 = vmatprep.mubr.f32.mxu0 0.0
    %211 = vmatmul.mubr.f32.gmra.mxu0 %v117
    %v212 = vpop.f32.mrf.mxu0
    %v213 = vadd.f32 %v139, %v212
    %v214 = vpop.f32.mrf.mxu0
    %215 = vdwg.mxu0
    %v216 = vmul.f32 %v208, %v208
    %v217 = vmul.f32 %v213, %v213
    %218 = vadd.xlane.f32.xlu0 %v216
    %v219 = vpop.xlane.xlu0 %218
    %220 = vadd.xlane.f32.xlu0 %v217
    %v221 = vpop.xlane.xlu0 %220
    %v222 = vmax.f32 %v219, 1e-24
    %v223 = vmax.f32 %v221, 1e-24
    %v224 = vrsqrt.pop %v222
    %v225 = vrsqrt.pop %v223
    %v226 = vmul.f32 %v208, %v224
    %v227 = vmul.f32 %v213, %v225
    %228 = vst [vmem:[#allocation2] sm:$0xff] %v226
    %229 = vst [vmem:[#allocation2 + $0x8] sm:$0xff] %v227
    // Predicated region
    $region22: #{feat_nn_forward.1} parent=1 // pred_check
      _
    $region23: #{feat_nn_forward.1} parent=1 // pred_check_branch
      %231 = sbr.rel (0) target = $region25
    $region24: #{feat_nn_forward.1} parent=1 // pred_region
      %s233 = ssub.s32 256, 256
      %234 = vsyncadd [#allocation3], %s233
      %s235 = sshll.u32 [#allocation2], 4
      %s236 = int_to_ptr.vmem [resolvable:$true] %s235
      %241 = dma.vmem_to_hbm [thread:$0]  %s236, 256, %s5, [#allocation3], 128, 128, 8
    $region25: #{feat_nn_forward.1} parent=1 // pred_fallthru
      _
    // Predicated region
    $region26: #{feat_nn_forward.1} parent=1 // pred_check
      _
    $region27: #{feat_nn_forward.1} parent=1 // pred_check_branch
      %243 = sbr.rel (0) target = $region29
    $region28: #{feat_nn_forward.1} parent=1 // pred_region
      %244 = dma.done [#allocation3], 256
    $region29: #{feat_nn_forward.1} parent=1 // pred_fallthru
      _
    %245 = vsyncpa [#allocation3], 1

</llo_original>
